<compile_context>
chip_gen: v7x
topology: tpu7x:2x2x1
jax: 0.10.0
libtpu: 0.0.40
codegen_flags: <defaults>
</compile_context>

<pallas_src>
import functools

import jax
import jax.numpy as jnp
from jax.experimental import pallas as pl
from jax.experimental.pallas import tpu as pltpu


def _round_up(n, m):
    return ((n + m - 1) // m) * m


def _cdiv(a, b):
    return -(-a // b)


def _actor_critic_kernel(x_ref, w1_ref, b1_ref, wh_ref, bh_ref, out_ref, *, na):
    # x arrives f32; cast to bf16 on the VPU (hidden under MXU/DMA) instead of
    # paying a separate wrapper-side XLA cast pass over x in HBM.
    x_bf = x_ref[...].astype(jnp.bfloat16)

    # Hidden layer: (bb, D)bf16 @ (D, 256)bf16 -> f32 accumulate, bias, relu.
    h = jnp.dot(x_bf, w1_ref[...], preferred_element_type=jnp.float32)
    h = jnp.maximum(h + b1_ref[...], 0.0)

    # Fused policy+critic head, kept in f32 (N = na+1 is tiny, cost ~nothing;
    # keeps the critic value at f32 fidelity).
    z = jnp.dot(h, wh_ref[...], preferred_element_type=jnp.float32)
    z = z + bh_ref[...]

    # Softmax over the first `na` columns only; last column is the value head.
    # Column mask instead of lane slicing/concat (stays full-vreg).
    col = jax.lax.broadcasted_iota(jnp.int32, z.shape, dimension=1)
    is_policy = col < na
    logits = jnp.where(is_policy, z, -jnp.inf)
    m = jnp.max(logits, axis=-1, keepdims=True)
    e = jnp.exp(logits - m)                       # value column -> exp(-inf)=0
    denom = jnp.sum(e, axis=-1, keepdims=True)
    pa = e / denom                                # exact normalization

    # Columns [0, na): softmax probs; column na: raw value.
    out_ref[...] = jnp.where(is_policy, pa, z).astype(out_ref.dtype)


def prepare_params(params):
    """One-time transform of f32 PyTorch-layout params into kernel params:
    fuse the critic head into the policy head.  W1 (the big weight) is cast to
    bf16 for HBM traffic / MXU; the fused head stays f32 (tiny, preserves the
    value head's f32 accuracy)."""
    w1, b1, wp, bp, wc, bc = params
    wh = jnp.concatenate([wp, wc], axis=1).astype(jnp.float32)   # (256, na+1)
    bh = jnp.concatenate([bp, bc], axis=1).astype(jnp.float32)   # (1,  na+1)
    return (w1.astype(jnp.bfloat16), b1.astype(jnp.float32), wh, bh)


def _pick_batch_tile(B, block_b):
    """Batch tile: as large as possible (per-grid-step overhead dominates this
    kernel), but guarantee >=2 grid steps when the batch would otherwise fit
    in a single tile so both v7x TensorCores get work."""
    if B <= 8:
        return B                         # one tiny full-dim block, grid=(1,)
    bb = min(block_b, _round_up(B, 8))
    if B <= bb:
        bb = _round_up(_cdiv(B, 2), 8)   # split across the two TCs
    return bb


def mlp_actor_critic_forward(x, fused_params, *, block_b=1024):
    """x: (B, nc, H, H) float32.  Returns (pa (B, na), V (B,)) in float32."""
    w1, b1, wh, bh = fused_params
    B = x.shape[0]
    in_dim, hidden = w1.shape
    nh = wh.shape[1]
    na = nh - 1

    # Matches torch .contiguous().view(-1, nc*H*H); stays f32 (cast in-kernel).
    x_flat = x.reshape(B, in_dim)

    bb = _pick_batch_tile(B, block_b)
    grid = (_cdiv(B, bb),)   # no padding: Pallas handles the partial boundary block

    nbytes = lambda a: a.size * a.dtype.itemsize
    cost = pl.CostEstimate(
        flops=2 * B * (in_dim * hidden + hidden * nh),
        transcendentals=B * nh,
        bytes_accessed=(nbytes(x_flat) + nbytes(w1) + nbytes(b1)
                        + nbytes(wh) + nbytes(bh) + B * nh * 4),
    )

    out = pl.pallas_call(
        functools.partial(_actor_critic_kernel, na=na),
        out_shape=jax.ShapeDtypeStruct((B, nh), jnp.float32),
        grid=grid,
        in_specs=[
            pl.BlockSpec((bb, in_dim), lambda i: (i, 0)),       # x batch tile (f32)
            pl.BlockSpec((in_dim, hidden), lambda i: (0, 0)),   # W1 (VMEM-resident)
            pl.BlockSpec((1, hidden), lambda i: (0, 0)),        # b1 (resident)
            pl.BlockSpec((hidden, nh), lambda i: (0, 0)),       # fused head W
            pl.BlockSpec((1, nh), lambda i: (0, 0)),            # fused head b
        ],
        out_specs=pl.BlockSpec((bb, nh), lambda i: (i, 0)),
        compiler_params=pltpu.CompilerParams(
            dimension_semantics=("parallel",),    # batch axis -> 2 TCs on v7x
            vmem_limit_bytes=32 << 20,            # guardrail (v7x: 64 MiB physical)
        ),
        cost_estimate=cost,
    )(x_flat, w1, b1, wh, bh)

    pa = out[:, :na]
    v = out[:, na]
    return pa, v


def init_params(key, in_dim, hidden, na):
    """Deterministic init mimicking PyTorch nn.Linear default (uniform +-1/sqrt(fan_in)).
    Weights are stored transposed: (in_features, out_features), float32."""
    k1, k2, k3, k4, k5, k6 = jax.random.split(key, 6)

    def lin(kw, kb, fan_in, fan_out):
        bound = 1.0 / jnp.sqrt(float(fan_in))
        w = jax.random.uniform(kw, (fan_in, fan_out), jnp.float32, -bound, bound)
        b = jax.random.uniform(kb, (1, fan_out), jnp.float32, -bound, bound)
        return w, b

    w1, b1 = lin(k1, k2, in_dim, hidden)
    wp, bp = lin(k3, k4, hidden, na)
    wc, bc = lin(k5, k6, hidden, 1)
    return (w1, b1, wp, bp, wc, bc)


def reference_forward(x, params):
    """Pure-JAX f32 reference for correctness check."""
    w1, b1, wp, bp, wc, bc = params
    B = x.shape[0]
    xf = x.reshape(B, -1)
    h = jnp.maximum(xf @ w1 + b1, 0.0)
    logits = h @ wp + bp
    pa = jax.nn.softmax(logits, axis=-1)
    v = (h @ wc + bc).reshape(-1)
    return pa, v


if __name__ == "__main__":
    # Small shapes consistent with the module: H_in=16, nc=2, na=4, batch=2.
    B, nc, H_in, na, hidden = 2, 2, 16, 4, 256
    in_dim = nc * H_in * H_in  # 512

    key = jax.random.PRNGKey(0)
    kx, kp = jax.random.split(key)
    x = jax.random.normal(kx, (B, nc, H_in, H_in), dtype=jnp.float32)
    params = init_params(kp, in_dim, hidden, na)
    fused_params = prepare_params(params)   # one-time fuse + bf16 cast of W1

    pa, V = mlp_actor_critic_forward(x, fused_params)
    pa, V = jax.block_until_ready((pa, V))

    # Sanity check against pure-JAX f32 reference (loose tol: bf16 W1/x on MXU).
    pa_ref, v_ref = reference_forward(x, params)
    assert pa.shape == (B, na) and V.shape == (B,)
    assert jnp.allclose(jnp.sum(pa, axis=-1), 1.0, atol=1e-3)
    assert jnp.allclose(pa, pa_ref, atol=2e-2, rtol=2e-2)
    assert jnp.allclose(V, v_ref, atol=2e-2, rtol=2e-2)

    # Second check: non-divisible batch -> >=2-step grid with a partial boundary
    # block (exercises the cdiv grid, dual-TC split, and masked boundary writes).
    B2 = 20
    x2 = jax.random.normal(jax.random.PRNGKey(1), (B2, nc, H_in, H_in),
                           dtype=jnp.float32)
    pa2, V2 = jax.block_until_ready(mlp_actor_critic_forward(x2, fused_params))
    pa2_ref, v2_ref = reference_forward(x2, params)
    assert pa2.shape == (B2, na) and V2.shape == (B2,)
    assert jnp.allclose(pa2, pa2_ref, atol=2e-2, rtol=2e-2)
    assert jnp.allclose(V2, v2_ref, atol=2e-2, rtol=2e-2)

    print("KERNEL_OK")
</pallas_src>

<mosaic_0001>
module attributes {stable_mosaic.version = 11 : i64} {
  func.func @_actor_critic_kernel(%arg0: i32, %arg1: memref<2x512xf32, #tpu.memory_space<vmem>>, %arg2: memref<512x256xbf16, #tpu.memory_space<vmem>>, %arg3: memref<1x256xf32, #tpu.memory_space<vmem>>, %arg4: memref<256x5xf32, #tpu.memory_space<vmem>>, %arg5: memref<1x5xf32, #tpu.memory_space<vmem>>, %arg6: memref<2x5xf32, #tpu.memory_space<vmem>>) attributes {dimension_semantics = [#tpu.dimension_semantics<parallel>], iteration_bounds = array<i64: 1>, scalar_prefetch = 0 : i64, scratch_operands = 0 : i64, tpu.core_type = #tpu.core_type<tc>, window_params = [{transform_indices = @transform_0, window_bounds = array<i64: 2, 512>}, {pipeline_mode = #tpu.pipeline_mode<synchronous>, transform_indices = @transform_1, window_bounds = array<i64: 512, 256>}, {pipeline_mode = #tpu.pipeline_mode<synchronous>, transform_indices = @transform_2, window_bounds = array<i64: 1, 256>}, {pipeline_mode = #tpu.pipeline_mode<synchronous>, transform_indices = @transform_3, window_bounds = array<i64: 256, 5>}, {pipeline_mode = #tpu.pipeline_mode<synchronous>, transform_indices = @transform_4, window_bounds = array<i64: 1, 5>}, {transform_indices = @transform_5, window_bounds = array<i64: 2, 5>}]} {
    %c0 = arith.constant 0 : index
    %c0_0 = arith.constant 0 : index
    %0 = vector.load %arg1[%c0, %c0_0] : memref<2x512xf32, #tpu.memory_space<vmem>>, vector<2x512xf32>
    %1 = arith.truncf %0 : vector<2x512xf32> to vector<2x512xbf16>
    %c0_1 = arith.constant 0 : index
    %c0_2 = arith.constant 0 : index
    %2 = vector.load %arg2[%c0_1, %c0_2] : memref<512x256xbf16, #tpu.memory_space<vmem>>, vector<512x256xbf16>
    %cst = arith.constant dense<0.000000e+00> : vector<2x256xf32>
    %3 = tpu.matmul %1, %2, %cst {dimension_numbers = #tpu.dot_dimension_numbers<[1], [0], [0], [1], [0, 0, 1, 1], [], []>} : vector<2x512xbf16>, vector<512x256xbf16>, vector<2x256xf32> -> vector<2x256xf32>
    %c0_3 = arith.constant 0 : index
    %c0_4 = arith.constant 0 : index
    %4 = vector.load %arg3[%c0_3, %c0_4] : memref<1x256xf32, #tpu.memory_space<vmem>>, vector<1x256xf32>
    %5 = vector.broadcast %4 : vector<1x256xf32> to vector<2x256xf32>
    %6 = arith.addf %3, %5 : vector<2x256xf32>
    %cst_5 = arith.constant 0.000000e+00 : f32
    %7 = vector.broadcast %cst_5 : f32 to vector<2x256xf32>
    %8 = arith.maximumf %6, %7 : vector<2x256xf32>
    %c0_6 = arith.constant 0 : index
    %c0_7 = arith.constant 0 : index
    %9 = vector.load %arg4[%c0_6, %c0_7] : memref<256x5xf32, #tpu.memory_space<vmem>>, vector<256x5xf32>
    %cst_8 = arith.constant dense<0.000000e+00> : vector<2x5xf32>
    %10 = tpu.matmul %8, %9, %cst_8 {dimension_numbers = #tpu.dot_dimension_numbers<[1], [0], [0], [1], [0, 0, 1, 1], [], []>} : vector<2x256xf32>, vector<256x5xf32>, vector<2x5xf32> -> vector<2x5xf32>
    %c0_9 = arith.constant 0 : index
    %c0_10 = arith.constant 0 : index
    %11 = vector.load %arg5[%c0_9, %c0_10] : memref<1x5xf32, #tpu.memory_space<vmem>>, vector<1x5xf32>
    %12 = vector.broadcast %11 : vector<1x5xf32> to vector<2x5xf32>
    %13 = arith.addf %10, %12 : vector<2x5xf32>
    %14 = tpu.iota {dimensions = array<i32: 1>} : vector<2x5xi32>
    %c4_i32 = arith.constant 4 : i32
    %15 = vector.broadcast %c4_i32 : i32 to vector<2x5xi32>
    %16 = arith.cmpi slt, %14, %15 : vector<2x5xi32>
    %cst_11 = arith.constant 0xFF800000 : f32
    %17 = vector.broadcast %cst_11 : f32 to vector<2x5xf32>
    %18 = arith.select %16, %13, %17 : vector<2x5xi1>, vector<2x5xf32>
    %cst_12 = arith.constant dense<0xFF800000> : vector<2xf32>
    %19 = vector.multi_reduction <maximumf>, %18, %cst_12 [1] : vector<2x5xf32> to vector<2xf32>
    %20 = vector.shape_cast %19 : vector<2xf32> to vector<2x1xf32>
    %21 = vector.broadcast %20 : vector<2x1xf32> to vector<2x5xf32>
    %22 = arith.subf %18, %21 : vector<2x5xf32>
    %23 = math.exp %22 : vector<2x5xf32>
    %cst_13 = arith.constant dense<0.000000e+00> : vector<2xf32>
    %24 = vector.multi_reduction <add>, %23, %cst_13 [1] : vector<2x5xf32> to vector<2xf32>
    %25 = vector.shape_cast %24 : vector<2xf32> to vector<2x1xf32>
    %26 = vector.broadcast %25 : vector<2x1xf32> to vector<2x5xf32>
    %27 = arith.divf %23, %26 : vector<2x5xf32>
    %28 = arith.select %16, %27, %13 : vector<2x5xi1>, vector<2x5xf32>
    %c0_14 = arith.constant 0 : index
    %c0_15 = arith.constant 0 : index
    %29 = vector.load %arg6[%c0_14, %c0_15] : memref<2x5xf32, #tpu.memory_space<vmem>>, vector<2x5xf32>
    tpu.vector_store %arg6[%c0_14, %c0_15], %28 {strides = array<i32>} : memref<2x5xf32, #tpu.memory_space<vmem>>, vector<2x5xf32>,
    return
  }
  func.func @transform_0(%arg0: i32) -> (i32, i32) {
    %c0_i32 = arith.constant 0 : i32
    %c0_i32_0 = arith.constant 0 : i32
    return %arg0, %c0_i32 : i32, i32
  }
  func.func @transform_1(%arg0: i32) -> (i32, i32) {
    %c0_i32 = arith.constant 0 : i32
    %c0_i32_0 = arith.constant 0 : i32
    %c0_i32_1 = arith.constant 0 : i32
    return %c0_i32, %c0_i32_0 : i32, i32
  }
  func.func @transform_2(%arg0: i32) -> (i32, i32) {
    %c0_i32 = arith.constant 0 : i32
    %c0_i32_0 = arith.constant 0 : i32
    %c0_i32_1 = arith.constant 0 : i32
    return %c0_i32, %c0_i32_0 : i32, i32
  }
  func.func @transform_3(%arg0: i32) -> (i32, i32) {
    %c0_i32 = arith.constant 0 : i32
    %c0_i32_0 = arith.constant 0 : i32
    %c0_i32_1 = arith.constant 0 : i32
    return %c0_i32, %c0_i32_0 : i32, i32
  }
  func.func @transform_4(%arg0: i32) -> (i32, i32) {
    %c0_i32 = arith.constant 0 : i32
    %c0_i32_0 = arith.constant 0 : i32
    %c0_i32_1 = arith.constant 0 : i32
    return %c0_i32, %c0_i32_0 : i32, i32
  }
  func.func @transform_5(%arg0: i32) -> (i32, i32) {
    %c0_i32 = arith.constant 0 : i32
    %c0_i32_0 = arith.constant 0 : i32
    return %arg0, %c0_i32 : i32, i32
  }
}

</mosaic_0001>

<llo_original>
// kernel: tpu_custom_call.1
$region0: #{tpu_custom_call.1}
  #allocation0 [shape = 'u32[]', space=smem, size = 0x4, offset = 0x4, fixed_abs, tag = 'smem constant byte address 0x4 - core index']
  #allocation1 [shape = 'u32[144,128]{1,0:T(1,128)}', space=vmem, size = 0x12000, scoped, tag = 'internal scratch']
  %s0 = inlined_call_operand.vmem [shape: f32[2,512], index: 0, kind: input, shape index: {}]
  %s1 = inlined_call_operand.hbm [shape: bf16[512,256], index: 1, kind: input, shape index: {}]
  %s2 = inlined_call_operand.vmem [shape: f32[1,256], index: 2, kind: input, shape index: {}]
  %s3 = inlined_call_operand.vmem [shape: f32[256,5], index: 3, kind: input, shape index: {}]
  %s4 = inlined_call_operand.vmem [shape: f32[1,5], index: 4, kind: input, shape index: {}]
  %s5 = inlined_call_operand.hbm [shape: f32[2,5], index: 5, kind: output, shape index: {}]
  %s6 = sld [smem:[#allocation0]]
  $region34: #{tpu_custom_call.1} parent=0
    _
  %s8 = ssub.s32 1, %s6
  %s9 = scalar_select 0, %s8, %s6
  $region1: #{tpu_custom_call.1} parent=0
    #allocation2 [shape = 'u8[262144]{0}', space=vmem, size = 0x40000, scoped, tag = 'input window, operand 1, single buffered']
    #allocation3 [shape = 's32[1]{0}', space=sflag, size = 0x4, scoped, tag = 'scoped memory for tpu_custom_call.1']
    #allocation4 [shape = 's32[1]{0}', space=sflag, size = 0x4, scoped, tag = 'scoped memory for tpu_custom_call.1']
    #allocation5 [shape = 'u8[1024]{0}', space=vmem, size = 0x400, scoped, tag = 'output window, operand 0, single buffered']
    %10 = vsyncpa [#allocation3], 0
    %11 = vsyncpa [#allocation4], 0
    // Predicated region
    $region2: #{tpu_custom_call.1} parent=1 // pred_check
      _
    $region3: #{tpu_custom_call.1} parent=1 // pred_check_branch
      %13 = sbr.rel (0) target = $region5
    $region4: #{tpu_custom_call.1} parent=1 // pred_region
      _
    $region5: #{tpu_custom_call.1} parent=1 // pred_fallthru
      _
    // Predicated region
    $region6: #{tpu_custom_call.1} parent=1 // pred_check
      _
    $region7: #{tpu_custom_call.1} parent=1 // pred_check_branch
      %15 = sbr.rel (0) target = $region9
    $region8: #{tpu_custom_call.1} parent=1 // pred_region
      %s17 = ssub.s32 8192, 8192
      %18 = vsyncadd [#allocation3], %s17
      %s19 = sshll.u32 [#allocation2], 4
      %s20 = int_to_ptr.vmem [resolvable:$true] %s19
      %25 = dma.hbm_to_vmem [thread:$0]  %s1, 8192, %s20, [#allocation3], 128, 128, 8
    $region9: #{tpu_custom_call.1} parent=1 // pred_fallthru
      _
    // Predicated region
    $region10: #{tpu_custom_call.1} parent=1 // pred_check
      _
    $region11: #{tpu_custom_call.1} parent=1 // pred_check_branch
      %27 = sbr.rel (0) target = $region13
    $region12: #{tpu_custom_call.1} parent=1 // pred_region
      _
    $region13: #{tpu_custom_call.1} parent=1 // pred_fallthru
      _
    // Predicated region
    $region14: #{tpu_custom_call.1} parent=1 // pred_check
      _
    $region15: #{tpu_custom_call.1} parent=1 // pred_check_branch
      %29 = sbr.rel (0) target = $region17
    $region16: #{tpu_custom_call.1} parent=1 // pred_region
      _
    $region17: #{tpu_custom_call.1} parent=1 // pred_fallthru
      _
    // Predicated region
    $region18: #{tpu_custom_call.1} parent=1 // pred_check
      _
    $region19: #{tpu_custom_call.1} parent=1 // pred_check_branch
      %31 = sbr.rel (0) target = $region21
    $region20: #{tpu_custom_call.1} parent=1 // pred_region
      _
    $region21: #{tpu_custom_call.1} parent=1 // pred_fallthru
      _
    // Predicated region
    $region22: #{tpu_custom_call.1} parent=1 // pred_check
      _
    $region23: #{tpu_custom_call.1} parent=1 // pred_check_branch
      %33 = sbr.rel (0) target = $region25
    $region24: #{tpu_custom_call.1} parent=1 // pred_region
      %34 = dma.done [#allocation3], 8192
    $region25: #{tpu_custom_call.1} parent=1 // pred_fallthru
      _
    %v35 = vld [vmem:[%s0] sm:$0xff]
    %v37 = vcombine.high %v35, %v35
    %v39 = vunpack.c.l.s4 1983009808
    %v40 = vunpack.c.0.s8 %v39
    %v41 = vlaneseq
    %v42 = vshrl.u32 %v41, 7
    %v43 = vsub.s32 %v40, %v42
    %v44 = vrot.slane %v35, %v43
    %v46 = vunpack.c.l.s4 1983009808
    %v47 = vunpack.c.0.s8 %v46
    %v48 = vlaneseq
    %v49 = vshrl.u32 %v48, 7
    %v50 = vsub.s32 %v47, %v49
    %v51 = vrot.slane %v37, %v50
    %v52 = vcombine.high %v44, %v44
    %v53 = vcombine.high %v51, %v51
    %v58 = vpack.c.bf16 %v44, %v44
    %v59 = vpack.c.bf16 %v52, %v52
    %v60 = vpack.c.bf16 %v51, %v51
    %v61 = vpack.c.bf16 %v53, %v53
    %v62 = vld [vmem:[#allocation2] sm:$0xff]
    %v63 = vld [vmem:[#allocation2 + $0x8] sm:$0xff]
    %v64 = vld [vmem:[#allocation2 + $0x10] sm:$0xff]
    %v65 = vld [vmem:[#allocation2 + $0x18] sm:$0xff]
    %v66 = vld [vmem:[#allocation2 + $0x20] sm:$0xff]
    %v67 = vld [vmem:[#allocation2 + $0x28] sm:$0xff]
    %v68 = vld [vmem:[#allocation2 + $0x30] sm:$0xff]
    %v69 = vld [vmem:[#allocation2 + $0x38] sm:$0xff]
    %v70 = vld [vmem:[#allocation2 + $0x40] sm:$0xff]
    %v71 = vld [vmem:[#allocation2 + $0x48] sm:$0xff]
    %v72 = vld [vmem:[#allocation2 + $0x50] sm:$0xff]
    %v73 = vld [vmem:[#allocation2 + $0x58] sm:$0xff]
    %v74 = vld [vmem:[#allocation2 + $0x60] sm:$0xff]
    %v75 = vld [vmem:[#allocation2 + $0x68] sm:$0xff]
    %v76 = vld [vmem:[#allocation2 + $0x70] sm:$0xff]
    %v77 = vld [vmem:[#allocation2 + $0x78] sm:$0xff]
    %v78 = vld [vmem:[#allocation2 + $0x80] sm:$0xff]
    %v79 = vld [vmem:[#allocation2 + $0x88] sm:$0xff]
    %v80 = vld [vmem:[#allocation2 + $0x90] sm:$0xff]
    %v81 = vld [vmem:[#allocation2 + $0x98] sm:$0xff]
    %v82 = vld [vmem:[#allocation2 + $0xa0] sm:$0xff]
    %v83 = vld [vmem:[#allocation2 + $0xa8] sm:$0xff]
    %v84 = vld [vmem:[#allocation2 + $0xb0] sm:$0xff]
    %v85 = vld [vmem:[#allocation2 + $0xb8] sm:$0xff]
    %v86 = vld [vmem:[#allocation2 + $0xc0] sm:$0xff]
    %v87 = vld [vmem:[#allocation2 + $0xc8] sm:$0xff]
    %v88 = vld [vmem:[#allocation2 + $0xd0] sm:$0xff]
    %v89 = vld [vmem:[#allocation2 + $0xd8] sm:$0xff]
    %v90 = vld [vmem:[#allocation2 + $0xe0] sm:$0xff]
    %v91 = vld [vmem:[#allocation2 + $0xe8] sm:$0xff]
    %v92 = vld [vmem:[#allocation2 + $0xf0] sm:$0xff]
    %v93 = vld [vmem:[#allocation2 + $0xf8] sm:$0xff]
    %v94 = vld [vmem:[#allocation2 + $0x100] sm:$0xff]
    %v95 = vld [vmem:[#allocation2 + $0x108] sm:$0xff]
    %v96 = vld [vmem:[#allocation2 + $0x110] sm:$0xff]
    %v97 = vld [vmem:[#allocation2 + $0x118] sm:$0xff]
    %v98 = vld [vmem:[#allocation2 + $0x120] sm:$0xff]
    %v99 = vld [vmem:[#allocation2 + $0x128] sm:$0xff]
    %v100 = vld [vmem:[#allocation2 + $0x130] sm:$0xff]
    %v101 = vld [vmem:[#allocation2 + $0x138] sm:$0xff]
    %v102 = vld [vmem:[#allocation2 + $0x140] sm:$0xff]
    %v103 = vld [vmem:[#allocation2 + $0x148] sm:$0xff]
    %v104 = vld [vmem:[#allocation2 + $0x150] sm:$0xff]
    %v105 = vld [vmem:[#allocation2 + $0x158] sm:$0xff]
    %v106 = vld [vmem:[#allocation2 + $0x160] sm:$0xff]
    %v107 = vld [vmem:[#allocation2 + $0x168] sm:$0xff]
    %v108 = vld [vmem:[#allocation2 + $0x170] sm:$0xff]
    %v109 = vld [vmem:[#allocation2 + $0x178] sm:$0xff]
    %v110 = vld [vmem:[#allocation2 + $0x180] sm:$0xff]
    %v111 = vld [vmem:[#allocation2 + $0x188] sm:$0xff]
    %v112 = vld [vmem:[#allocation2 + $0x190] sm:$0xff]
    %v113 = vld [vmem:[#allocation2 + $0x198] sm:$0xff]
    %v114 = vld [vmem:[#allocation2 + $0x1a0] sm:$0xff]
    %v115 = vld [vmem:[#allocation2 + $0x1a8] sm:$0xff]
    %v116 = vld [vmem:[#allocation2 + $0x1b0] sm:$0xff]
    %v117 = vld [vmem:[#allocation2 + $0x1b8] sm:$0xff]
    %v118 = vld [vmem:[#allocation2 + $0x1c0] sm:$0xff]
    %v119 = vld [vmem:[#allocation2 + $0x1c8] sm:$0xff]
    %v120 = vld [vmem:[#allocation2 + $0x1d0] sm:$0xff]
    %v121 = vld [vmem:[#allocation2 + $0x1d8] sm:$0xff]
    %v122 = vld [vmem:[#allocation2 + $0x1e0] sm:$0xff]
    %v123 = vld [vmem:[#allocation2 + $0x1e8] sm:$0xff]
    %v124 = vld [vmem:[#allocation2 + $0x1f0] sm:$0xff]
    %v125 = vld [vmem:[#allocation2 + $0x1f8] sm:$0xff]
    %v126 = vld [vmem:[%s2] sm:$0x3]
    %v128 = vlaneseq
    %v129 = vshrl.u32 %v128, 7
    %v130 = vsub.s32 0, %v129
    %v131 = vrot.slane %v126, %v130
    %v132 = vlaneseq
    %v133 = vshrl.u32 %v132, 7
    %v134 = vsub.s32 1, %v133
    %v135 = vrot.slane %v126, %v134
    %v202 = vunpack.c.l.b16 %v62
    %v203 = vunpack.c.h.b16 %v62
    %v204 = vunpack.c.l.b16 %v63
    %v205 = vunpack.c.h.b16 %v63
    %v206 = vunpack.c.l.b16 %v64
    %v207 = vunpack.c.h.b16 %v64
    %v208 = vunpack.c.l.b16 %v65
    %v209 = vunpack.c.h.b16 %v65
    %v210 = vunpack.c.l.b16 %v66
    %v211 = vunpack.c.h.b16 %v66
    %v212 = vunpack.c.l.b16 %v67
    %v213 = vunpack.c.h.b16 %v67
    %v214 = vunpack.c.l.b16 %v68
    %v215 = vunpack.c.h.b16 %v68
    %v216 = vunpack.c.l.b16 %v69
    %v217 = vunpack.c.h.b16 %v69
    %v218 = vunpack.c.l.b16 %v70
    %v219 = vunpack.c.h.b16 %v70
    %v220 = vunpack.c.l.b16 %v71
    %v221 = vunpack.c.h.b16 %v71
    %v222 = vunpack.c.l.b16 %v72
    %v223 = vunpack.c.h.b16 %v72
    %v224 = vunpack.c.l.b16 %v73
    %v225 = vunpack.c.h.b16 %v73
    %v226 = vunpack.c.l.b16 %v74
    %v227 = vunpack.c.h.b16 %v74
    %v228 = vunpack.c.l.b16 %v75
    %v229 = vunpack.c.h.b16 %v75
    %v230 = vunpack.c.l.b16 %v76
    %v231 = vunpack.c.h.b16 %v76
    %v232 = vunpack.c.l.b16 %v77
    %v233 = vunpack.c.h.b16 %v77
    %v234 = vunpack.c.l.b16 %v78
    %v235 = vunpack.c.h.b16 %v78
    %v236 = vunpack.c.l.b16 %v79
    %v237 = vunpack.c.h.b16 %v79
    %v238 = vunpack.c.l.b16 %v80
    %v239 = vunpack.c.h.b16 %v80
    %v240 = vunpack.c.l.b16 %v81
    %v241 = vunpack.c.h.b16 %v81
    %v242 = vunpack.c.l.b16 %v82
    %v243 = vunpack.c.h.b16 %v82
    %v244 = vunpack.c.l.b16 %v83
    %v245 = vunpack.c.h.b16 %v83
    %v246 = vunpack.c.l.b16 %v84
    %v247 = vunpack.c.h.b16 %v84
    %v248 = vunpack.c.l.b16 %v85
    %v249 = vunpack.c.h.b16 %v85
    %v250 = vunpack.c.l.b16 %v86
    %v251 = vunpack.c.h.b16 %v86
    %v252 = vunpack.c.l.b16 %v87
    %v253 = vunpack.c.h.b16 %v87
    %v254 = vunpack.c.l.b16 %v88
    %v255 = vunpack.c.h.b16 %v88
    %v256 = vunpack.c.l.b16 %v89
    %v257 = vunpack.c.h.b16 %v89
    %v258 = vunpack.c.l.b16 %v90
    %v259 = vunpack.c.h.b16 %v90
    %v260 = vunpack.c.l.b16 %v91
    %v261 = vunpack.c.h.b16 %v91
    %v262 = vunpack.c.l.b16 %v92
    %v263 = vunpack.c.h.b16 %v92
    %v264 = vunpack.c.l.b16 %v93
    %v265 = vunpack.c.h.b16 %v93
    %v266 = vunpack.c.l.b16 %v94
    %v267 = vunpack.c.h.b16 %v94
    %v268 = vunpack.c.l.b16 %v95
    %v269 = vunpack.c.h.b16 %v95
    %v270 = vunpack.c.l.b16 %v96
    %v271 = vunpack.c.h.b16 %v96
    %v272 = vunpack.c.l.b16 %v97
    %v273 = vunpack.c.h.b16 %v97
    %v274 = vunpack.c.l.b16 %v98
    %v275 = vunpack.c.h.b16 %v98
    %v276 = vunpack.c.l.b16 %v99
    %v277 = vunpack.c.h.b16 %v99
    %v278 = vunpack.c.l.b16 %v100
    %v279 = vunpack.c.h.b16 %v100
    %v280 = vunpack.c.l.b16 %v101
    %v281 = vunpack.c.h.b16 %v101
    %v282 = vunpack.c.l.b16 %v102
    %v283 = vunpack.c.h.b16 %v102
    %v284 = vunpack.c.l.b16 %v103
    %v285 = vunpack.c.h.b16 %v103
    %v286 = vunpack.c.l.b16 %v104
    %v287 = vunpack.c.h.b16 %v104
    %v288 = vunpack.c.l.b16 %v105
    %v289 = vunpack.c.h.b16 %v105
    %v290 = vunpack.c.l.b16 %v106
    %v291 = vunpack.c.h.b16 %v106
    %v292 = vunpack.c.l.b16 %v107
    %v293 = vunpack.c.h.b16 %v107
    %v294 = vunpack.c.l.b16 %v108
    %v295 = vunpack.c.h.b16 %v108
    %v296 = vunpack.c.l.b16 %v109
    %v297 = vunpack.c.h.b16 %v109
    %v298 = vunpack.c.l.b16 %v110
    %v299 = vunpack.c.h.b16 %v110
    %v300 = vunpack.c.l.b16 %v111
    %v301 = vunpack.c.h.b16 %v111
    %v302 = vunpack.c.l.b16 %v112
    %v303 = vunpack.c.h.b16 %v112
    %v304 = vunpack.c.l.b16 %v113
    %v305 = vunpack.c.h.b16 %v113
    %v306 = vunpack.c.l.b16 %v114
    %v307 = vunpack.c.h.b16 %v114
    %v308 = vunpack.c.l.b16 %v115
    %v309 = vunpack.c.h.b16 %v115
    %v310 = vunpack.c.l.b16 %v116
    %v311 = vunpack.c.h.b16 %v116
    %v312 = vunpack.c.l.b16 %v117
    %v313 = vunpack.c.h.b16 %v117
    %v314 = vunpack.c.l.b16 %v118
    %v315 = vunpack.c.h.b16 %v118
    %v316 = vunpack.c.l.b16 %v119
    %v317 = vunpack.c.h.b16 %v119
    %v318 = vunpack.c.l.b16 %v120
    %v319 = vunpack.c.h.b16 %v120
    %v320 = vunpack.c.l.b16 %v121
    %v321 = vunpack.c.h.b16 %v121
    %v322 = vunpack.c.l.b16 %v122
    %v323 = vunpack.c.h.b16 %v122
    %v324 = vunpack.c.l.b16 %v123
    %v325 = vunpack.c.h.b16 %v123
    %v326 = vunpack.c.l.b16 %v124
    %v327 = vunpack.c.h.b16 %v124
    %v328 = vunpack.c.l.b16 %v125
    %v329 = vunpack.c.h.b16 %v125
    %v330 = vpack.c.b16 %v204, %v202
    %v331 = vpack.c.b16 %v205, %v203
    %v332 = vpack.c.b16 %v208, %v206
    %v333 = vpack.c.b16 %v209, %v207
    %v334 = vpack.c.b16 %v212, %v210
    %v335 = vpack.c.b16 %v213, %v211
    %v336 = vpack.c.b16 %v216, %v214
    %v337 = vpack.c.b16 %v217, %v215
    %v338 = vpack.c.b16 %v220, %v218
    %v339 = vpack.c.b16 %v221, %v219
    %v340 = vpack.c.b16 %v224, %v222
    %v341 = vpack.c.b16 %v225, %v223
    %v342 = vpack.c.b16 %v228, %v226
    %v343 = vpack.c.b16 %v229, %v227
    %v344 = vpack.c.b16 %v232, %v230
    %v345 = vpack.c.b16 %v233, %v231
    %v346 = vpack.c.b16 %v236, %v234
    %v347 = vpack.c.b16 %v237, %v235
    %v348 = vpack.c.b16 %v240, %v238
    %v349 = vpack.c.b16 %v241, %v239
    %v350 = vpack.c.b16 %v244, %v242
    %v351 = vpack.c.b16 %v245, %v243
    %v352 = vpack.c.b16 %v248, %v246
    %v353 = vpack.c.b16 %v249, %v247
    %v354 = vpack.c.b16 %v252, %v250
    %v355 = vpack.c.b16 %v253, %v251
    %v356 = vpack.c.b16 %v256, %v254
    %v357 = vpack.c.b16 %v257, %v255
    %v358 = vpack.c.b16 %v260, %v258
    %v359 = vpack.c.b16 %v261, %v259
    %v360 = vpack.c.b16 %v264, %v262
    %v361 = vpack.c.b16 %v265, %v263
    %v362 = vpack.c.b16 %v268, %v266
    %v363 = vpack.c.b16 %v269, %v267
    %v364 = vpack.c.b16 %v272, %v270
    %v365 = vpack.c.b16 %v273, %v271
    %v366 = vpack.c.b16 %v276, %v274
    %v367 = vpack.c.b16 %v277, %v275
    %v368 = vpack.c.b16 %v280, %v278
    %v369 = vpack.c.b16 %v281, %v279
    %v370 = vpack.c.b16 %v284, %v282
    %v371 = vpack.c.b16 %v285, %v283
    %v372 = vpack.c.b16 %v288, %v286
    %v373 = vpack.c.b16 %v289, %v287
    %v374 = vpack.c.b16 %v292, %v290
    %v375 = vpack.c.b16 %v293, %v291
    %v376 = vpack.c.b16 %v296, %v294
    %v377 = vpack.c.b16 %v297, %v295
    %v378 = vpack.c.b16 %v300, %v298
    %v379 = vpack.c.b16 %v301, %v299
    %v380 = vpack.c.b16 %v304, %v302
    %v381 = vpack.c.b16 %v305, %v303
    %v382 = vpack.c.b16 %v308, %v306
    %v383 = vpack.c.b16 %v309, %v307
    %v384 = vpack.c.b16 %v312, %v310
    %v385 = vpack.c.b16 %v313, %v311
    %v386 = vpack.c.b16 %v316, %v314
    %v387 = vpack.c.b16 %v317, %v315
    %v388 = vpack.c.b16 %v320, %v318
    %v389 = vpack.c.b16 %v321, %v319
    %v390 = vpack.c.b16 %v324, %v322
    %v391 = vpack.c.b16 %v325, %v323
    %v392 = vpack.c.b16 %v328, %v326
    %v393 = vpack.c.b16 %v329, %v327
    %458 = vmatprep.subr.bf16.mxu0 %v331
    %459 = vmatpush1.bf16.msra.mxu0 %v330
    %460 = vmatprep.subr.bf16.mxu0 %v333
    %461 = vmatpush1.bf16.msra.mxu0 %v332
    %462 = vmatprep.subr.bf16.mxu0 %v335
    %463 = vmatpush1.bf16.msra.mxu0 %v334
    %464 = vmatprep.subr.bf16.mxu0 %v337
    %465 = vmatpush1.bf16.msra.mxu0 %v336
    %466 = vmatprep.subr.bf16.mxu0 %v339
    %467 = vmatpush1.bf16.msra.mxu0 %v338
    %468 = vmatprep.subr.bf16.mxu0 %v341
    %469 = vmatpush1.bf16.msra.mxu0 %v340
    %470 = vmatprep.subr.bf16.mxu0 %v343
    %471 = vmatpush1.bf16.msra.mxu0 %v342
    %472 = vmatprep.subr.bf16.mxu0 %v345
    %473 = vmatpush1.bf16.msra.mxu0 %v344
    %474 = vmatprep.subr.bf16.mxu0 %v347
    %475 = vmatpush1.bf16.msra.mxu0 %v346
    %476 = vmatprep.subr.bf16.mxu0 %v349
    %477 = vmatpush1.bf16.msra.mxu0 %v348
    %478 = vmatprep.subr.bf16.mxu0 %v351
    %479 = vmatpush1.bf16.msra.mxu0 %v350
    %480 = vmatprep.subr.bf16.mxu0 %v353
    %481 = vmatpush1.bf16.msra.mxu0 %v352
    %482 = vmatprep.subr.bf16.mxu0 %v355
    %483 = vmatpush1.bf16.msra.mxu0 %v354
    %484 = vmatprep.subr.bf16.mxu0 %v357
    %485 = vmatpush1.bf16.msra.mxu0 %v356
    %486 = vmatprep.subr.bf16.mxu0 %v359
    %487 = vmatpush1.bf16.msra.mxu0 %v358
    %488 = vmatprep.subr.bf16.mxu0 %v361
    %489 = vmatpush1.bf16.msra.mxu0 %v360
    %490 = vmatprep.mubr.bf16.mxu0 %v59
    %491 = vmatmul.mubr.bf16.gmra.mrb[0].mxu0 %v58
    %v492 = vpop.f32.mrb[0].mxu0
    %v493 = vadd.f32 %v131, %v492
    %v494 = vpop.f32.mrb[0].mxu0
    %v495 = vadd.f32 %v135, %v494
    %v496 = vpop.f32.mrb[0].mxu0
    %v497 = vpop.f32.mrb[0].mxu0
    %498 = vdwg.mxu0
    %499 = vmatprep.subr.bf16.mxu0 %v363
    %500 = vmatpush1.bf16.msra.mxu0 %v362
    %501 = vmatprep.subr.bf16.mxu0 %v365
    %502 = vmatpush1.bf16.msra.mxu0 %v364
    %503 = vmatprep.subr.bf16.mxu0 %v367
    %504 = vmatpush1.bf16.msra.mxu0 %v366
    %505 = vmatprep.subr.bf16.mxu0 %v369
    %506 = vmatpush1.bf16.msra.mxu0 %v368
    %507 = vmatprep.subr.bf16.mxu0 %v371
    %508 = vmatpush1.bf16.msra.mxu0 %v370
    %509 = vmatprep.subr.bf16.mxu0 %v373
    %510 = vmatpush1.bf16.msra.mxu0 %v372
    %511 = vmatprep.subr.bf16.mxu0 %v375
    %512 = vmatpush1.bf16.msra.mxu0 %v374
    %513 = vmatprep.subr.bf16.mxu0 %v377
    %514 = vmatpush1.bf16.msra.mxu0 %v376
    %515 = vmatprep.subr.bf16.mxu0 %v379
    %516 = vmatpush1.bf16.msra.mxu0 %v378
    %517 = vmatprep.subr.bf16.mxu0 %v381
    %518 = vmatpush1.bf16.msra.mxu0 %v380
    %519 = vmatprep.subr.bf16.mxu0 %v383
    %520 = vmatpush1.bf16.msra.mxu0 %v382
    %521 = vmatprep.subr.bf16.mxu0 %v385
    %522 = vmatpush1.bf16.msra.mxu0 %v384
    %523 = vmatprep.subr.bf16.mxu0 %v387
    %524 = vmatpush1.bf16.msra.mxu0 %v386
    %525 = vmatprep.subr.bf16.mxu0 %v389
    %526 = vmatpush1.bf16.msra.mxu0 %v388
    %527 = vmatprep.subr.bf16.mxu0 %v391
    %528 = vmatpush1.bf16.msra.mxu0 %v390
    %529 = vmatprep.subr.bf16.mxu0 %v393
    %530 = vmatpush1.bf16.msra.mxu0 %v392
    %531 = vmatprep.mubr.bf16.mxu0 %v61
    %532 = vmatmul.mubr.bf16.gmra.mrb[0].mxu0 %v60
    %v533 = vpop.f32.mrb[0].mxu0
    %v534 = vadd.f32 %v493, %v533
    %v535 = vpop.f32.mrb[0].mxu0
    %v536 = vadd.f32 %v495, %v535
    %v537 = vpop.f32.mrb[0].mxu0
    %v538 = vpop.f32.mrb[0].mxu0
    %539 = vdwg.mxu0
    %v540 = vmax.f32 %v534, 0.0
    %v541 = vmax.f32 %v536, 0.0
    %v542 = vld [vmem:[%s3] sm:$0xff]
    %v543 = vld [vmem:[%s3 + $0x8] sm:$0xff]
    %v544 = vld [vmem:[%s3 + $0x10] sm:$0xff]
    %v545 = vld [vmem:[%s3 + $0x18] sm:$0xff]
    %v546 = vld [vmem:[%s3 + $0x20] sm:$0xff]
    %v547 = vld [vmem:[%s3 + $0x28] sm:$0xff]
    %v548 = vld [vmem:[%s3 + $0x30] sm:$0xff]
    %v549 = vld [vmem:[%s3 + $0x38] sm:$0xff]
    %v550 = vld [vmem:[%s3 + $0x40] sm:$0xff]
    %v551 = vld [vmem:[%s3 + $0x48] sm:$0xff]
    %v552 = vld [vmem:[%s3 + $0x50] sm:$0xff]
    %v553 = vld [vmem:[%s3 + $0x58] sm:$0xff]
    %v554 = vld [vmem:[%s3 + $0x60] sm:$0xff]
    %v555 = vld [vmem:[%s3 + $0x68] sm:$0xff]
    %v556 = vld [vmem:[%s3 + $0x70] sm:$0xff]
    %v557 = vld [vmem:[%s3 + $0x78] sm:$0xff]
    %v558 = vld [vmem:[%s3 + $0x80] sm:$0xff]
    %v559 = vld [vmem:[%s3 + $0x88] sm:$0xff]
    %v560 = vld [vmem:[%s3 + $0x90] sm:$0xff]
    %v561 = vld [vmem:[%s3 + $0x98] sm:$0xff]
    %v562 = vld [vmem:[%s3 + $0xa0] sm:$0xff]
    %v563 = vld [vmem:[%s3 + $0xa8] sm:$0xff]
    %v564 = vld [vmem:[%s3 + $0xb0] sm:$0xff]
    %v565 = vld [vmem:[%s3 + $0xb8] sm:$0xff]
    %v566 = vld [vmem:[%s3 + $0xc0] sm:$0xff]
    %v567 = vld [vmem:[%s3 + $0xc8] sm:$0xff]
    %v568 = vld [vmem:[%s3 + $0xd0] sm:$0xff]
    %v569 = vld [vmem:[%s3 + $0xd8] sm:$0xff]
    %v570 = vld [vmem:[%s3 + $0xe0] sm:$0xff]
    %v571 = vld [vmem:[%s3 + $0xe8] sm:$0xff]
    %v572 = vld [vmem:[%s3 + $0xf0] sm:$0xff]
    %v573 = vld [vmem:[%s3 + $0xf8] sm:$0xff]
    %v574 = vld [vmem:[%s4] sm:$0x1]
    %v576 = vlaneseq
    %v577 = vshrl.u32 %v576, 7
    %v578 = vsub.s32 0, %v577
    %v579 = vrot.slane %v574, %v578
    %581 = vmatprep.subr.mxu0 0.0
    %582 = vmatpush1.msra.mxu0 %v542
    %583 = vmatprep.subr.mxu0 0.0
    %584 = vmatpush1.msra.mxu0 %v543
    %585 = vmatprep.subr.mxu0 0.0
    %586 = vmatpush1.msra.mxu0 %v544
    %587 = vmatprep.subr.mxu0 0.0
    %588 = vmatpush1.msra.mxu0 %v545
    %589 = vmatprep.subr.mxu0 0.0
    %590 = vmatpush1.msra.mxu0 %v546
    %591 = vmatprep.subr.mxu0 0.0
    %592 = vmatpush1.msra.mxu0 %v547
    %593 = vmatprep.subr.mxu0 0.0
    %594 = vmatpush1.msra.mxu0 %v548
    %595 = vmatprep.subr.mxu0 0.0
    %596 = vmatpush1.msra.mxu0 %v549
    %597 = vmatprep.subr.mxu0 0.0
    %598 = vmatpush1.msra.mxu0 %v550
    %599 = vmatprep.subr.mxu0 0.0
    %600 = vmatpush1.msra.mxu0 %v551
    %601 = vmatprep.subr.mxu0 0.0
    %602 = vmatpush1.msra.mxu0 %v552
    %603 = vmatprep.subr.mxu0 0.0
    %604 = vmatpush1.msra.mxu0 %v553
    %605 = vmatprep.subr.mxu0 0.0
    %606 = vmatpush1.msra.mxu0 %v554
    %607 = vmatprep.subr.mxu0 0.0
    %608 = vmatpush1.msra.mxu0 %v555
    %609 = vmatprep.subr.mxu0 0.0
    %610 = vmatpush1.msra.mxu0 %v556
    %611 = vmatprep.subr.mxu0 0.0
    %612 = vmatpush1.msra.mxu0 %v557
    %613 = vmatprep.subr.mxu0 0.0
    %614 = vmatpush1.msra.mxu0 %v558
    %615 = vmatprep.subr.mxu0 0.0
    %616 = vmatpush1.msra.mxu0 %v559
    %617 = vmatprep.subr.mxu0 0.0
    %618 = vmatpush1.msra.mxu0 %v560
    %619 = vmatprep.subr.mxu0 0.0
    %620 = vmatpush1.msra.mxu0 %v561
    %621 = vmatprep.subr.mxu0 0.0
    %622 = vmatpush1.msra.mxu0 %v562
    %623 = vmatprep.subr.mxu0 0.0
    %624 = vmatpush1.msra.mxu0 %v563
    %625 = vmatprep.subr.mxu0 0.0
    %626 = vmatpush1.msra.mxu0 %v564
    %627 = vmatprep.subr.mxu0 0.0
    %628 = vmatpush1.msra.mxu0 %v565
    %629 = vmatprep.subr.mxu0 0.0
    %630 = vmatpush1.msra.mxu0 %v566
    %631 = vmatprep.subr.mxu0 0.0
    %632 = vmatpush1.msra.mxu0 %v567
    %633 = vmatprep.subr.mxu0 0.0
    %634 = vmatpush1.msra.mxu0 %v568
    %635 = vmatprep.subr.mxu0 0.0
    %636 = vmatpush1.msra.mxu0 %v569
    %637 = vmatprep.subr.mxu0 0.0
    %638 = vmatpush1.msra.mxu0 %v570
    %639 = vmatprep.subr.mxu0 0.0
    %640 = vmatpush1.msra.mxu0 %v571
    %641 = vmatprep.subr.mxu0 0.0
    %642 = vmatpush1.msra.mxu0 %v572
    %643 = vmatprep.subr.mxu0 0.0
    %644 = vmatpush1.msra.mxu0 %v573
    %645 = vmatprep.mubr.f32.mxu0 %v541
    %646 = vmatmul.mubr.f32.gmra.mrb[0].mxu0 %v540
    %v647 = vpop.f32.mrb[0].mxu0
    %v648 = vadd.f32 %v579, %v647
    %v649 = vpop.f32.mrb[0].mxu0
    %650 = vdwg.mxu0
    %v651 = vlaneseq
    %v652 = vand.u32 %v651, 127
    %vm653 = vcmp.lt.s32.totalorder %v652, 4
    %v654 = vsel %vm653, %v648, -inf
    %vm655 = vcmask 33792
    %v656 = vsel %vm655, %v654, -inf
    %657 = vmax.xlane.f32.xlu0 %v656
    %v658 = vpop.xlane.xlu0 %657
    %v659 = vsub.f32 %v654, %v658
    %v660 = vmul.f32 %v659, 1.442695
    %v661 = vpow.pop %v660
    %v662 = vsel %vm655, %v661, 0.0
    %663 = vadd.xlane.f32.xlu0 %v662
    %v664 = vpop.xlane.xlu0 %663
    %v665 = vrcp.pop %v664
    %v666 = vmul.f32 %v661, %v665
    %v667 = vsel %vm653, %v666, %v648
    %668 = vst.msk [vmem:[#allocation5] sm:$0x3] %vm655, %v667
    // Predicated region
    $region26: #{tpu_custom_call.1} parent=1 // pred_check
      _
    $region27: #{tpu_custom_call.1} parent=1 // pred_check_branch
      %670 = sbr.rel (0) target = $region29
    $region28: #{tpu_custom_call.1} parent=1 // pred_region
      %s672 = ssub.s32 32, 32
      %673 = vsyncadd [#allocation4], %s672
      %s675 = sshll.u32 [#allocation5], 4
      %s676 = int_to_ptr.vmem [resolvable:$true] %s675
      %678 = dma.vmem_to_hbm [thread:$0]  %s676, 32, %s5, [#allocation4]
    $region29: #{tpu_custom_call.1} parent=1 // pred_fallthru
      _
    // Predicated region
    $region30: #{tpu_custom_call.1} parent=1 // pred_check
      _
    $region31: #{tpu_custom_call.1} parent=1 // pred_check_branch
      %680 = sbr.rel (0) target = $region33
    $region32: #{tpu_custom_call.1} parent=1 // pred_region
      %681 = dma.done [#allocation4], 32
    $region33: #{tpu_custom_call.1} parent=1 // pred_fallthru
      _
    %682 = vsyncpa [#allocation3], 1
    %683 = vsyncpa [#allocation4], 1

</llo_original>
